<compile_context>
chip_gen: v5e
topology: v5e:2x2
jax: 0.10.0
libtpu: 0.0.40
codegen_flags: <defaults>
</compile_context>

<pallas_src>
import functools

import jax
import jax.numpy as jnp
from jax import lax
from jax.experimental import pallas as pl
from jax.experimental.pallas import tpu as pltpu

_EPS = 1e-8    # torch.nn.CosineSimilarity eps (clamped per-norm here)
_TINY = 1e-30  # keeps log() argument positive if all negatives underflow

# Contract the last dim of both operands (A @ B^T) -- MXU-native, no transpose.
_NT = (((1,), (1,)), ((), ()))


def _l2_normalize(x):
    x = x.astype(jnp.float32)
    sq = jnp.sum(x * x, axis=-1, keepdims=True)
    return x * lax.rsqrt(jnp.maximum(sq, _EPS * _EPS))


# ----------------------------------------------------------------------------
# Kernel: per-row logsumexp over j != i of sim[i, j] / T, flash-style.
# rows_ref / cols_ref are tiles of the SAME pre-normalized, pre-cast reps.
# ----------------------------------------------------------------------------
def _ntxent_rowlse_kernel(rows_ref, cols_ref, out_ref, acc_ref, *, inv_t, pad_cols):
    k = pl.program_id(1)

    @pl.when(k == 0)
    def _():
        acc_ref[...] = jnp.zeros_like(acc_ref)

    s = lax.dot_general(rows_ref[...], cols_ref[...], _NT,
                        preferred_element_type=jnp.float32)          # (TM, TK) f32
    acc_ref[...] += jnp.sum(jnp.exp((s - 1.0) * inv_t), axis=-1, keepdims=True)

    @pl.when(k == pl.num_programs(1) - 1)
    def _():
        xr = rows_ref[...].astype(jnp.float32)
        # Remove the self-similarity term; computed from the same (possibly
        # bf16-cast) vectors that fed the MXU so it cancels the diagonal.
        corr = jnp.exp((jnp.sum(xr * xr, axis=-1, keepdims=True) - 1.0) * inv_t)
        if pad_cols:
            # Zero-padded columns have sim exactly 0 -> each adds exp(-1/T).
            corr = corr + pad_cols * jnp.exp(jnp.zeros_like(corr) - inv_t)
        ssum = jnp.maximum(acc_ref[...] - corr, _TINY)
        out_ref[...] = inv_t + jnp.log(ssum)


def _vmem_capacity_bytes():
    try:
        return int(pltpu.get_tpu_info().vmem_capacity_bytes)
    except Exception:
        return 64 * 1024 * 1024   # conservative default (v7x physical VMEM)


def _tiled_vmem_bytes(tile, dp, mm_bytes):
    stream = 2 * (2 * tile * dp * mm_bytes)       # double-buffered row + col tiles
    out = 2 * tile * 4 + tile * 4                 # out tile (dbuf) + acc scratch
    tmp = 3 * tile * tile * 4                     # s, exp(s), slack
    return stream + out + tmp


def _choose_tile(n, dp, mm_bytes, vmem_budget):
    """Largest tile from {512, 256, 128} keeping >= 2 row blocks (so v7x's two
    TensorCores both get work on the 'parallel' axis) and fitting the budget."""
    for t in (512, 256, 128):
        if 2 * t > n:
            continue
        if _tiled_vmem_bytes(t, dp, mm_bytes) <= vmem_budget:
            return t
    return None


def _run_rowlse(reps_mm, tile, pad_cols, inv_t, vmem_cap):
    n_pad, dp = reps_mm.shape
    g = n_pad // tile
    mm_bytes = reps_mm.dtype.itemsize
    need = _tiled_vmem_bytes(tile, dp, mm_bytes)
    # Explicit scoped-VMEM limit sized from the footprint, capped below the
    # chip's physical VMEM (important on v7x: 64 MiB).
    vmem_limit = int(min(0.9 * vmem_cap, max(32 * 1024 * 1024, 2 * need)))
    kernel = functools.partial(_ntxent_rowlse_kernel, inv_t=inv_t, pad_cols=pad_cols)
    return pl.pallas_call(
        kernel,
        out_shape=jax.ShapeDtypeStruct((n_pad, 1), jnp.float32),
        grid_spec=pltpu.PrefetchScalarGridSpec(
            num_scalar_prefetch=0,
            grid=(g, g),
            in_specs=[
                pl.BlockSpec((tile, dp), lambda i, k: (i, 0)),   # row tile
                pl.BlockSpec((tile, dp), lambda i, k: (k, 0)),   # col tile
            ],
            out_specs=pl.BlockSpec((tile, 1), lambda i, k: (i, 0)),
            scratch_shapes=[pltpu.VMEM((tile, 1), jnp.float32)],
        ),
        compiler_params=pltpu.CompilerParams(
            dimension_semantics=("parallel", "arbitrary"),
            vmem_limit_bytes=vmem_limit),
        cost_estimate=pl.CostEstimate(
            flops=2 * n_pad * n_pad * dp,
            transcendentals=n_pad * n_pad,
            bytes_accessed=(g + 1) * n_pad * dp * mm_bytes + n_pad * 4),
    )(reps_mm, reps_mm)


def ntxent_loss_binary(zis, zjs, temperature=0.5, mm_dtype=jnp.bfloat16):
    """Pallas TPU implementation of NTXentLossBinary.forward (cosine sim)."""
    assert zis.shape == zjs.shape and zis.ndim == 2
    b, d = zis.shape
    n = 2 * b
    inv_t = 1.0 / float(temperature)

    # Pad the feature dim to a multiple of 128 lanes; zero features change
    # neither norms nor dot products, so the loss is unaffected.
    dp = ((d + 127) // 128) * 128
    if dp != d:
        zjs = jnp.pad(zjs, ((0, 0), (0, dp - d)))
        zis = jnp.pad(zis, ((0, 0), (0, dp - d)))

    # O(n*dp) preprocessing outside the kernel: normalize in f32, compute the
    # exact positive logits, cast ONCE to the MXU dtype.
    xj = _l2_normalize(zjs)      # rows 0..B-1 of reps = zjs
    xi = _l2_normalize(zis)      # rows B..2B-1 of reps = zis
    pos_total = 2.0 * inv_t * jnp.sum(xj * xi)                    # f32 scalar
    reps_mm = jnp.concatenate([xj, xi], axis=0).astype(mm_dtype)  # (n, dp)

    vmem_cap = _vmem_capacity_bytes()
    mm_bytes = jnp.dtype(mm_dtype).itemsize
    tile = _choose_tile(n, dp, mm_bytes, int(0.6 * vmem_cap)) if n >= 256 else None

    if tile is None:
        tile, pad_cols = n, 0          # single full block, grid (1, 1)
    else:
        n_pad = ((n + tile - 1) // tile) * tile
        pad_cols = n_pad - n
        if pad_cols:                   # zero rows; corrected inside the kernel
            reps_mm = jnp.pad(reps_mm, ((0, pad_cols), (0, 0)))

    per_row = _run_rowlse(reps_mm, tile, pad_cols, inv_t, vmem_cap)
    lse_sum = jnp.sum(per_row[:n, 0])
    return (lse_sum - pos_total) / n


def _reference_loss(zis, zjs, temperature=0.5):
    """Pure-JAX reference mirroring the PyTorch module (cosine similarity)."""
    reps = jnp.concatenate([zjs, zis], axis=0).astype(jnp.float32)
    b = zis.shape[0]
    n = 2 * b
    xn = reps / jnp.maximum(jnp.linalg.norm(reps, axis=-1, keepdims=True), _EPS)
    sim = xn @ xn.T / temperature
    idx = jnp.arange(n)
    pos = sim[idx, (idx + b) % n]
    masked = jnp.where(jnp.eye(n, dtype=bool), -jnp.inf, sim)
    lse = jax.scipy.special.logsumexp(masked, axis=-1)
    return jnp.sum(lse - pos) / n


if __name__ == "__main__":
    key = jax.random.PRNGKey(0)
    k1, k2, k3, k4, k5, k6 = jax.random.split(key, 6)
    temperature = 0.5

    # 1) Small shapes -> single-block path, exact f32 matmul, tight tolerance.
    B, D = 4, 32
    zis = jax.random.normal(k1, (B, D), dtype=jnp.float32)
    zjs = jax.random.normal(k2, (B, D), dtype=jnp.float32)
    loss = jax.block_until_ready(
        ntxent_loss_binary(zis, zjs, temperature, mm_dtype=jnp.float32))
    ref = jax.block_until_ready(_reference_loss(zis, zjs, temperature))
    assert jnp.allclose(loss, ref, rtol=1e-5, atol=1e-5), (loss, ref)

    # 2) Larger shapes -> tiled (grid) path with the default bf16 MXU matmul.
    B2, D2 = 512, 96
    zis2 = jax.random.normal(k3, (B2, D2), dtype=jnp.float32)
    zjs2 = jax.random.normal(k4, (B2, D2), dtype=jnp.float32)
    loss2 = jax.block_until_ready(ntxent_loss_binary(zis2, zjs2, temperature))
    ref2 = jax.block_until_ready(_reference_loss(zis2, zjs2, temperature))
    assert jnp.allclose(loss2, ref2, rtol=1e-2, atol=1e-2), (loss2, ref2)

    # 3) Awkward batch (2B not a tile multiple) -> tiled path with zero-row
    #    padding + in-kernel correction, exact f32 matmul, tight tolerance.
    B3, D3 = 300, 40
    zis3 = jax.random.normal(k5, (B3, D3), dtype=jnp.float32)
    zjs3 = jax.random.normal(k6, (B3, D3), dtype=jnp.float32)
    loss3 = jax.block_until_ready(
        ntxent_loss_binary(zis3, zjs3, temperature, mm_dtype=jnp.float32))
    ref3 = jax.block_until_ready(_reference_loss(zis3, zjs3, temperature))
    assert jnp.allclose(loss3, ref3, rtol=1e-4, atol=1e-4), (loss3, ref3)

    print("KERNEL_OK")
</pallas_src>

<mosaic_0001>
module attributes {stable_mosaic.version = 11 : i64} {
  func.func @_ntxent_rowlse_kernel(%arg0: i32, %arg1: i32, %arg2: memref<8x128xf32, #tpu.memory_space<vmem>>, %arg3: memref<8x128xf32, #tpu.memory_space<vmem>>, %arg4: memref<8x1xf32, #tpu.memory_space<vmem>>, %arg5: memref<8x1xf32, #tpu.memory_space<vmem>>) attributes {dimension_semantics = [#tpu.dimension_semantics<parallel>, #tpu.dimension_semantics<arbitrary>], iteration_bounds = array<i64: 1, 1>, scalar_prefetch = 0 : i64, scratch_operands = 1 : i64, tpu.core_type = #tpu.core_type<tc>, window_params = [{transform_indices = @transform_0, window_bounds = array<i64: 8, 128>}, {transform_indices = @transform_1, window_bounds = array<i64: 8, 128>}, {transform_indices = @transform_2, window_bounds = array<i64: 8, 1>}]} {
    %c0_i32 = arith.constant 0 : i32
    %0 = arith.cmpi eq, %arg1, %c0_i32 : i32
    %1 = arith.extui %0 : i1 to i32
    %c0_i32_0 = arith.constant 0 : i32
    %2 = arith.cmpi ne, %1, %c0_i32_0 : i32
    scf.if %2 {
      %cst_13 = arith.constant 0.000000e+00 : f32
      %19 = vector.broadcast %cst_13 : f32 to vector<8x1xf32>
      %c0_14 = arith.constant 0 : index
      %c0_15 = arith.constant 0 : index
      %20 = vector.load %arg5[%c0_14, %c0_15] : memref<8x1xf32, #tpu.memory_space<vmem>>, vector<8x1xf32>
      tpu.vector_store %arg5[%c0_14, %c0_15], %19 {strides = array<i32>} : memref<8x1xf32, #tpu.memory_space<vmem>>, vector<8x1xf32>,
    } else {
    }
    %c0 = arith.constant 0 : index
    %c0_1 = arith.constant 0 : index
    %3 = vector.load %arg2[%c0, %c0_1] : memref<8x128xf32, #tpu.memory_space<vmem>>, vector<8x128xf32>
    %c0_2 = arith.constant 0 : index
    %c0_3 = arith.constant 0 : index
    %4 = vector.load %arg3[%c0_2, %c0_3] : memref<8x128xf32, #tpu.memory_space<vmem>>, vector<8x128xf32>
    %cst = arith.constant dense<0.000000e+00> : vector<8x8xf32>
    %5 = tpu.matmul %3, %4, %cst {dimension_numbers = #tpu.dot_dimension_numbers<[1], [1], [0], [0], [0, 0, 1, 0], [], []>} : vector<8x128xf32>, vector<8x128xf32>, vector<8x8xf32> -> vector<8x8xf32>
    %c0_4 = arith.constant 0 : index
    %c0_5 = arith.constant 0 : index
    %6 = vector.load %arg5[%c0_4, %c0_5] : memref<8x1xf32, #tpu.memory_space<vmem>>, vector<8x1xf32>
    %cst_6 = arith.constant 1.000000e+00 : f32
    %7 = vector.broadcast %cst_6 : f32 to vector<8x8xf32>
    %8 = arith.subf %5, %7 : vector<8x8xf32>
    %cst_7 = arith.constant 2.000000e+00 : f32
    %9 = vector.broadcast %cst_7 : f32 to vector<8x8xf32>
    %10 = arith.mulf %8, %9 : vector<8x8xf32>
    %11 = math.exp %10 : vector<8x8xf32>
    %cst_8 = arith.constant dense<0.000000e+00> : vector<8xf32>
    %12 = vector.multi_reduction <add>, %11, %cst_8 [1] : vector<8x8xf32> to vector<8xf32>
    %13 = vector.shape_cast %12 : vector<8xf32> to vector<8x1xf32>
    %14 = arith.addf %6, %13 : vector<8x1xf32>
    %c0_9 = arith.constant 0 : index
    %c0_10 = arith.constant 0 : index
    %15 = vector.load %arg5[%c0_9, %c0_10] : memref<8x1xf32, #tpu.memory_space<vmem>>, vector<8x1xf32>
    tpu.vector_store %arg5[%c0_9, %c0_10], %14 {strides = array<i32>} : memref<8x1xf32, #tpu.memory_space<vmem>>, vector<8x1xf32>,
    %c0_i32_11 = arith.constant 0 : i32
    %16 = arith.cmpi eq, %arg1, %c0_i32_11 : i32
    %17 = arith.extui %16 : i1 to i32
    %c0_i32_12 = arith.constant 0 : i32
    %18 = arith.cmpi ne, %17, %c0_i32_12 : i32
    scf.if %18 {
      %c0_13 = arith.constant 0 : index
      %c0_14 = arith.constant 0 : index
      %19 = vector.load %arg2[%c0_13, %c0_14] : memref<8x128xf32, #tpu.memory_space<vmem>>, vector<8x128xf32>
      %20 = arith.mulf %19, %19 : vector<8x128xf32>
      %cst_15 = arith.constant dense<0.000000e+00> : vector<8xf32>
      %21 = vector.multi_reduction <add>, %20, %cst_15 [1] : vector<8x128xf32> to vector<8xf32>
      %22 = vector.shape_cast %21 : vector<8xf32> to vector<8x1xf32>
      %cst_16 = arith.constant 1.000000e+00 : f32
      %23 = vector.broadcast %cst_16 : f32 to vector<8x1xf32>
      %24 = arith.subf %22, %23 : vector<8x1xf32>
      %cst_17 = arith.constant 2.000000e+00 : f32
      %25 = vector.broadcast %cst_17 : f32 to vector<8x1xf32>
      %26 = arith.mulf %24, %25 : vector<8x1xf32>
      %27 = math.exp %26 : vector<8x1xf32>
      %c0_18 = arith.constant 0 : index
      %c0_19 = arith.constant 0 : index
      %28 = vector.load %arg5[%c0_18, %c0_19] : memref<8x1xf32, #tpu.memory_space<vmem>>, vector<8x1xf32>
      %29 = arith.subf %28, %27 : vector<8x1xf32>
      %cst_20 = arith.constant 1.000000e-30 : f32
      %30 = vector.broadcast %cst_20 : f32 to vector<8x1xf32>
      %31 = arith.maximumf %29, %30 : vector<8x1xf32>
      %32 = math.log %31 : vector<8x1xf32>
      %cst_21 = arith.constant 2.000000e+00 : f32
      %33 = vector.broadcast %cst_21 : f32 to vector<8x1xf32>
      %34 = arith.addf %33, %32 : vector<8x1xf32>
      %c0_22 = arith.constant 0 : index
      %c0_23 = arith.constant 0 : index
      %35 = vector.load %arg4[%c0_22, %c0_23] : memref<8x1xf32, #tpu.memory_space<vmem>>, vector<8x1xf32>
      tpu.vector_store %arg4[%c0_22, %c0_23], %34 {strides = array<i32>} : memref<8x1xf32, #tpu.memory_space<vmem>>, vector<8x1xf32>,
    } else {
    }
    return
  }
  func.func @transform_0(%arg0: i32, %arg1: i32) -> (i32, i32) {
    %c0_i32 = arith.constant 0 : i32
    %c0_i32_0 = arith.constant 0 : i32
    return %arg0, %c0_i32 : i32, i32
  }
  func.func @transform_1(%arg0: i32, %arg1: i32) -> (i32, i32) {
    %c0_i32 = arith.constant 0 : i32
    %c0_i32_0 = arith.constant 0 : i32
    return %arg1, %c0_i32 : i32, i32
  }
  func.func @transform_2(%arg0: i32, %arg1: i32) -> (i32, i32) {
    %c0_i32 = arith.constant 0 : i32
    %c0_i32_0 = arith.constant 0 : i32
    return %arg0, %c0_i32 : i32, i32
  }
}

</mosaic_0001>

<llo_original>
// kernel: tpu_custom_call.1
$region0: #{tpu_custom_call.1}
  #allocation0 [shape = 'u32[]', space=smem, size = 0x4, offset = 0x4, fixed_abs, tag = 'smem constant byte address 0x4 - core index']
  #allocation1 [shape = 'u32[72,128]{1,0:T(1,128)}', space=vmem, size = 0x9000, scoped, tag = 'internal scratch']
  #allocation2 [shape = 'f32[8,1]{1,0:T(8,128)}', space=vmem, size = 0x1000, scoped, tag = 'scratch operand']
  %s0 = inlined_call_operand.hbm [shape: f32[8,128], index: 0, kind: input, shape index: {}]
  %s1 = inlined_call_operand.hbm [shape: f32[8,128], index: 1, kind: input, shape index: {}]
  %s2 = inlined_call_operand.vmem [shape: f32[8,1], index: 2, kind: output, shape index: {}]
  %s3 = sld [smem:[#allocation0]]
  $region34: #{tpu_custom_call.1} parent=0
    _
  %s5 = ssub.s32 1, %s3
  %s6 = scalar_select 0, %s5, %s3
  $region1: #{tpu_custom_call.1} parent=0
    #allocation3 [shape = 'u8[4096]{0}', space=vmem, size = 0x1000, scoped, tag = 'input window, operand 0, single buffered']
    #allocation4 [shape = 's32[1]{0}', space=sflag, size = 0x4, scoped, tag = 'scoped memory for tpu_custom_call.1']
    #allocation5 [shape = 'u8[4096]{0}', space=vmem, size = 0x1000, scoped, tag = 'input window, operand 1, single buffered']
    #allocation6 [shape = 's32[1]{0}', space=sflag, size = 0x4, scoped, tag = 'scoped memory for tpu_custom_call.1']
    %7 = vsyncpa [#allocation4], 0
    %8 = vsyncpa [#allocation6], 0
    // Predicated region
    $region2: #{tpu_custom_call.1} parent=1 // pred_check
      _
    $region3: #{tpu_custom_call.1} parent=1 // pred_check_branch
      %10 = sbr.rel (0) target = $region5
    $region4: #{tpu_custom_call.1} parent=1 // pred_region
      %12 = vsyncadd [#allocation4], 0
      %s14 = sshll.u32 %s0, 4
      %s15 = int_to_ptr.hbm [resolvable:$true] %s14
      %s16 = sshll.u32 [#allocation3], 4
      %s17 = int_to_ptr.vmem [resolvable:$true] %s16
      %19 = dma.hbm_to_vmem [thread:$0]  %s15, 128, %s17, [#allocation4]
    $region5: #{tpu_custom_call.1} parent=1 // pred_fallthru
      _
    // Predicated region
    $region6: #{tpu_custom_call.1} parent=1 // pred_check
      _
    $region7: #{tpu_custom_call.1} parent=1 // pred_check_branch
      %21 = sbr.rel (0) target = $region9
    $region8: #{tpu_custom_call.1} parent=1 // pred_region
      %23 = vsyncadd [#allocation6], 0
      %s25 = sshll.u32 %s1, 4
      %s26 = int_to_ptr.hbm [resolvable:$true] %s25
      %s27 = sshll.u32 [#allocation5], 4
      %s28 = int_to_ptr.vmem [resolvable:$true] %s27
      %30 = dma.hbm_to_vmem [thread:$0]  %s26, 128, %s28, [#allocation6]
    $region9: #{tpu_custom_call.1} parent=1 // pred_fallthru
      _
    // Predicated region
    $region10: #{tpu_custom_call.1} parent=1 // pred_check
      _
    $region11: #{tpu_custom_call.1} parent=1 // pred_check_branch
      %32 = sbr.rel (0) target = $region13
    $region12: #{tpu_custom_call.1} parent=1 // pred_region
      %34 = dma.done [#allocation4], 128
    $region13: #{tpu_custom_call.1} parent=1 // pred_fallthru
      _
    // Predicated region
    $region14: #{tpu_custom_call.1} parent=1 // pred_check
      _
    $region15: #{tpu_custom_call.1} parent=1 // pred_check_branch
      %36 = sbr.rel (0) target = $region17
    $region16: #{tpu_custom_call.1} parent=1 // pred_region
      %38 = dma.done [#allocation6], 128
    $region17: #{tpu_custom_call.1} parent=1 // pred_fallthru
      _
    %p39 = scmp.eq.s32.totalorder 0, 0
    // Predicated region
    $region18: #{tpu_custom_call.1} parent=1 // pred_check
      %p40 = pneg %p39
    $region19: #{tpu_custom_call.1} parent=1 // pred_check_branch
      %42 = sbr.rel (%p40) target = $region21
    $region20: #{tpu_custom_call.1} parent=1 // pred_region
      %vm43 = vcmask 7168
      %44 = vst.msk [vmem:[#allocation2] sm:$0xff] %vm43, 0.0
    $region21: #{tpu_custom_call.1} parent=1 // pred_fallthru
      _
    %v45 = vld [vmem:[#allocation3] sm:$0xff]
    %v46 = vld [vmem:[#allocation5] sm:$0xff]
    %47 = vmatpush.xpose.msra.mxu0 0.0
    %48 = vmatpush.xpose.msra.mxu0 0.0
    %49 = vmatpush.xpose.msra.mxu0 0.0
    %50 = vmatpush.xpose.msra.mxu0 0.0
    %51 = vmatpush.xpose.msra.mxu0 0.0
    %52 = vmatpush.xpose.msra.mxu0 0.0
    %53 = vmatpush.xpose.msra.mxu0 0.0
    %54 = vmatpush.xpose.msra.mxu0 0.0
    %55 = vmatpush.xpose.msra.mxu0 0.0
    %56 = vmatpush.xpose.msra.mxu0 0.0
    %57 = vmatpush.xpose.msra.mxu0 0.0
    %58 = vmatpush.xpose.msra.mxu0 0.0
    %59 = vmatpush.xpose.msra.mxu0 0.0
    %60 = vmatpush.xpose.msra.mxu0 0.0
    %61 = vmatpush.xpose.msra.mxu0 0.0
    %62 = vmatpush.xpose.msra.mxu0 %v46
    %63 = vmatmul.f32.gmra.mxu0 %v45
    %v64 = vpop.f32.mrf.mxu0
    %v65 = vadd.f32 0.0, %v64
    %66 = vdwg.mxu0
    %v67 = vld [vmem:[#allocation2] sm:$0xff]
    %v68 = vsub.f32 %v65, 1.0
    %v69 = vmul.f32 %v68, 2.0
    %v70 = vmul.f32 %v69, 1.442695
    %v71 = vpow.pop %v70
    %vm72 = vcmask 64512
    %v73 = vsel %vm72, %v71, 0.0
    %74 = vadd.xlane.f32.xlu0 %v73
    %v75 = vpop.xlane.xlu0 %74
    %v76 = vadd.f32 %v67, %v75
    %vm77 = vcmask 7168
    %78 = vst.msk [vmem:[#allocation2] sm:$0xff] %vm77, %v76
    // Predicated region
    $region22: #{tpu_custom_call.1} parent=1 // pred_check
      %p79 = pneg %p39
    $region23: #{tpu_custom_call.1} parent=1 // pred_check_branch
      %81 = sbr.rel (%p79) target = $region25
    $region24: #{tpu_custom_call.1} parent=1 // pred_region
      %v82 = vld [vmem:[#allocation3] sm:$0xff]
      %v83 = vmul.f32 %v82, %v82
      %84 = vadd.xlane.f32.xlu0 %v83
      %v85 = vpop.xlane.xlu0 %84
      %v86 = vsub.f32 %v85, 1.0
      %v87 = vmul.f32 %v86, 2.0
      %v88 = vmul.f32 %v87, 1.442695
      %v89 = vpow.pop %v88
      %v90 = vld [vmem:[#allocation2] sm:$0xff]
      %v91 = vsub.f32 %v90, %v89
      %v92 = vmax.f32 %v91, 1e-30
      %v93 = vlog2.pop %v92
      %v94 = vmul.f32 %v93, 0.6931472
      %v95 = vadd.f32 %v94, 2.0
      %96 = vst.msk [vmem:[%s2] sm:$0xff] %vm77, %v95
    $region25: #{tpu_custom_call.1} parent=1 // pred_fallthru
      _
    // Predicated region
    $region26: #{tpu_custom_call.1} parent=1 // pred_check
      _
    $region27: #{tpu_custom_call.1} parent=1 // pred_check_branch
      %98 = sbr.rel (0) target = $region29
    $region28: #{tpu_custom_call.1} parent=1 // pred_region
      _
    $region29: #{tpu_custom_call.1} parent=1 // pred_fallthru
      _
    // Predicated region
    $region30: #{tpu_custom_call.1} parent=1 // pred_check
      _
    $region31: #{tpu_custom_call.1} parent=1 // pred_check_branch
      %100 = sbr.rel (0) target = $region33
    $region32: #{tpu_custom_call.1} parent=1 // pred_region
      _
    $region33: #{tpu_custom_call.1} parent=1 // pred_fallthru
      _
    %101 = vsyncpa [#allocation4], 1
    %102 = vsyncpa [#allocation6], 1

</llo_original>
